<compile_context>
chip_gen: v5e
topology: v5e:2x2
jax: 0.10.0
libtpu: 0.0.40
codegen_flags: <defaults>
</compile_context>

<pallas_src>
import functools

import jax
import jax.numpy as jnp
from jax.experimental import pallas as pl
from jax.experimental.pallas import tpu as pltpu


_MAX_B_TILE = 256               # sublane cap (multiple of 32)
_MAX_S_TILE = 16384             # lane cap (multiple of 128)
_TARGET_STEP_BYTES = 8 << 20    # streamed-input bytes per grid step
_VMEM_LIMIT = 32 << 20          # valid on v5e / v6e / v7x


def _round_up(x, m):
    return ((x + m - 1) // m) * m


def _tiles(B, S, bytes_per_pos, target_step_bytes):
    # Batch (sublane) tile.
    if B <= 32:
        b_tile = B                      # full-dim block: always layout-legal
    else:
        # multiple of 32 (f32/bf16/int8 legal), >=2 parallel steps, cap 256.
        b_tile = min(_MAX_B_TILE, _round_up(pl.cdiv(B, 2), 32))
    # Sequence (lane) tile sized by bytes per grid step.
    s_target = target_step_bytes // max(1, b_tile * bytes_per_pos)
    s_target = max(128, (s_target // 128) * 128)
    s_target = min(s_target, _MAX_S_TILE)
    if S <= s_target:
        s_tile = S                      # single seq step, full-dim block
    else:
        s_tile = s_target               # multiple of 128; ragged tail masked
    return b_tile, s_tile


def _make_kernel(*, seq_len, s_tile, has_cm, has_rm, lane_groups, tail):
    """Build a kernel specialized (at trace time) for mask presence / tiling."""
    inv_s = 1.0 / float(seq_len)

    def kernel(*args):
        i = 0
        c_ref = args[i]; i += 1
        r_ref = args[i]; i += 1
        cm_ref = rm_ref = None
        if has_cm:
            cm_ref = args[i]; i += 1
        if has_rm:
            rm_ref = args[i]; i += 1
        out_ref = args[i]; i += 1
        c_num = args[i]; i += 1
        r_num = args[i]; i += 1
        c_den = r_den = None
        if has_cm:
            c_den = args[i]; i += 1
        if has_rm:
            r_den = args[i]; i += 1

        si = pl.program_id(1)

        @pl.when(si == 0)
        def _init():
            c_num[...] = jnp.zeros_like(c_num)
            r_num[...] = jnp.zeros_like(r_num)
            if has_cm:
                c_den[...] = jnp.zeros_like(c_den)
            if has_rm:
                r_den[...] = jnp.zeros_like(r_den)

        c = c_ref[...].astype(jnp.float32)
        r = r_ref[...].astype(jnp.float32)

        valid = None
        if tail:
            # Ragged sequence tail: zero OOB lanes with where (NaN-safe).
            lane = jax.lax.broadcasted_iota(jnp.int32, c.shape, 1)
            valid = (si * s_tile + lane) < seq_len
            c = jnp.where(valid, c, 0.0)
            r = jnp.where(valid, r, 0.0)

        def rowsum(x):
            # Lane-wise partial sums: 128-aligned static slices, pure VPU adds.
            if lane_groups is None:
                return jnp.sum(x, axis=-1, keepdims=True)
            acc = x[:, 0:128]
            for j in range(1, lane_groups):
                acc = acc + x[:, j * 128:(j + 1) * 128]
            return acc

        if has_cm:
            cm = cm_ref[...].astype(jnp.float32)
            if tail:
                cm = jnp.where(valid, cm, 0.0)
            c_num[...] += rowsum(c * cm)
            c_den[...] += rowsum(cm)
        else:
            c_num[...] += rowsum(c)

        if has_rm:
            rm = rm_ref[...].astype(jnp.float32)
            if tail:
                rm = jnp.where(valid, rm, 0.0)
            r_num[...] += rowsum(r * rm)
            r_den[...] += rowsum(rm)
        else:
            r_num[...] += rowsum(r)

        @pl.when(si == pl.num_programs(1) - 1)
        def _epilogue():
            cn = jnp.sum(c_num[...], axis=-1, keepdims=True)
            rn = jnp.sum(r_num[...], axis=-1, keepdims=True)
            if has_cm:
                c_mean = cn / jnp.sum(c_den[...], axis=-1, keepdims=True)
            else:
                c_mean = cn * inv_s
            if has_rm:
                r_mean = rn / jnp.sum(r_den[...], axis=-1, keepdims=True)
            else:
                r_mean = rn * inv_s
            d = c_mean - r_mean
            # -log(sigmoid(d)) == softplus(-d), numerically stable.
            out_ref[...] = jnp.maximum(-d, 0.0) + jnp.log1p(jnp.exp(-jnp.abs(d)))

    return kernel


def _loss(c, r, cm, rm, target_step_bytes):
    B, S = c.shape
    has_cm = cm is not None
    has_rm = rm is not None
    streams = [c, r] + ([cm] if has_cm else []) + ([rm] if has_rm else [])
    bytes_per_pos = sum(x.dtype.itemsize for x in streams)

    b_tile, s_tile = _tiles(B, S, bytes_per_pos, target_step_bytes)
    grid = (pl.cdiv(B, b_tile), pl.cdiv(S, s_tile))
    lane_groups = (s_tile // 128) if (s_tile % 128 == 0) else None
    tail = (S % s_tile) != 0
    acc_w = 128 if lane_groups is not None else 1
    n_scratch = 2 + int(has_cm) + int(has_rm)

    in_spec = pl.BlockSpec((b_tile, s_tile), lambda bi, si: (bi, si))
    out_spec = pl.BlockSpec((b_tile, 1), lambda bi, si: (bi, 0))

    kernel = _make_kernel(seq_len=S, s_tile=s_tile, has_cm=has_cm,
                          has_rm=has_rm, lane_groups=lane_groups, tail=tail)

    cost = pl.CostEstimate(
        flops=int((2 + 2 * int(has_cm) + 2 * int(has_rm)) * B * S + 12 * B),
        transcendentals=int(2 * B),
        bytes_accessed=int(sum(x.nbytes for x in streams) + B * 4),
    )

    per_example = pl.pallas_call(
        kernel,
        out_shape=jax.ShapeDtypeStruct((B, 1), jnp.float32),
        grid_spec=pltpu.PrefetchScalarGridSpec(
            num_scalar_prefetch=0,
            grid=grid,
            in_specs=[in_spec] * len(streams),
            out_specs=out_spec,
            scratch_shapes=[pltpu.VMEM((b_tile, acc_w), jnp.float32)] * n_scratch,
        ),
        compiler_params=pltpu.CompilerParams(
            dimension_semantics=("parallel", "arbitrary"),
            vmem_limit_bytes=_VMEM_LIMIT,
        ),
        cost_estimate=cost,
    )(*streams)

    # Tiny final batch mean in plain JAX (B scalars).
    return jnp.mean(per_example)


def pairwise_score_loss(chosen_rewards, rejected_rewards,
                        chosen_masks=None, rejected_masks=None,
                        *, target_step_bytes=_TARGET_STEP_BYTES):
    bzs = chosen_rewards.shape[0]
    c = chosen_rewards.reshape(bzs, -1)     # keep input dtype (bf16 stays bf16)
    r = rejected_rewards.reshape(bzs, -1)
    cm = None if chosen_masks is None else chosen_masks.reshape(bzs, -1)
    rm = None if rejected_masks is None else rejected_masks.reshape(bzs, -1)
    # Masks stream in their native dtype; only bool gets a 1-byte cast
    # (Pallas bool block IO is not relied upon).  f32 cast happens in-kernel.
    if cm is not None and cm.dtype == jnp.bool_:
        cm = cm.astype(jnp.int8)
    if rm is not None and rm.dtype == jnp.bool_:
        rm = rm.astype(jnp.int8)
    return _loss(c, r, cm, rm, target_step_bytes)


# --------------------------------------------------------------------------
# Pure-JAX reference + tests
# --------------------------------------------------------------------------

def _reference(chosen_rewards, rejected_rewards, chosen_masks=None,
               rejected_masks=None):
    bzs = chosen_rewards.shape[0]
    c = chosen_rewards.reshape(bzs, -1).astype(jnp.float32)
    r = rejected_rewards.reshape(bzs, -1).astype(jnp.float32)
    if chosen_masks is None:
        c_mean = c.mean(-1)
    else:
        cm = chosen_masks.reshape(bzs, -1).astype(jnp.float32)
        c_mean = (c * cm).sum(-1) / cm.sum(-1)
    if rejected_masks is None:
        r_mean = r.mean(-1)
    else:
        rm = rejected_masks.reshape(bzs, -1).astype(jnp.float32)
        r_mean = (r * rm).sum(-1) / rm.sum(-1)
    return (-jnp.log(jax.nn.sigmoid(c_mean - r_mean))).mean()


if __name__ == "__main__":
    key = jax.random.PRNGKey(0)
    ks = jax.random.split(key, 8)

    # Small shapes consistent with the module: batch=2, seq=8.
    B, S = 2, 8
    chosen_rewards = jax.random.normal(ks[0], (B, S), dtype=jnp.float32)
    rejected_rewards = jax.random.normal(ks[1], (B, S), dtype=jnp.float32)
    chosen_masks = (jax.random.uniform(ks[2], (B, S)) > 0.3).astype(jnp.float32)
    rejected_masks = (jax.random.uniform(ks[3], (B, S)) > 0.3).astype(jnp.float32)
    chosen_masks = chosen_masks.at[:, 0].set(1.0)      # non-empty rows
    rejected_masks = rejected_masks.at[:, 0].set(1.0)

    # 1) Fully masked path.
    loss = pairwise_score_loss(chosen_rewards, rejected_rewards,
                               chosen_masks, rejected_masks)
    jax.block_until_ready(loss)
    ref = _reference(chosen_rewards, rejected_rewards,
                     chosen_masks, rejected_masks)
    assert jnp.allclose(loss, ref, atol=1e-5, rtol=1e-5), (loss, ref)

    # 2) Unmasked path (no all-ones arrays materialized).
    loss_u = pairwise_score_loss(chosen_rewards, rejected_rewards)
    jax.block_until_ready(loss_u)
    ref_u = _reference(chosen_rewards, rejected_rewards)
    assert jnp.allclose(loss_u, ref_u, atol=1e-5, rtol=1e-5), (loss_u, ref_u)

    # 3) Asymmetric path (only chosen mask present).
    loss_a = pairwise_score_loss(chosen_rewards, rejected_rewards,
                                 chosen_masks=chosen_masks)
    jax.block_until_ready(loss_a)
    ref_a = _reference(chosen_rewards, rejected_rewards,
                       chosen_masks=chosen_masks)
    assert jnp.allclose(loss_a, ref_a, atol=1e-5, rtol=1e-5), (loss_a, ref_a)

    # 4) Multi-tile ragged path (exercises ragged batch + ragged sequence tail
    #    + lane-group accumulation) by forcing a small per-step byte target.
    B2, S2 = 40, 520
    c2 = jax.random.normal(ks[4], (B2, S2), dtype=jnp.float32)
    r2 = jax.random.normal(ks[5], (B2, S2), dtype=jnp.float32)
    cm2 = (jax.random.uniform(ks[6], (B2, S2)) > 0.25).astype(jnp.float32)
    rm2 = (jax.random.uniform(ks[7], (B2, S2)) > 0.25).astype(jnp.float32)
    cm2 = cm2.at[:, 0].set(1.0)
    rm2 = rm2.at[:, 0].set(1.0)
    loss2 = pairwise_score_loss(c2, r2, cm2, rm2, target_step_bytes=64 * 1024)
    jax.block_until_ready(loss2)
    ref2 = _reference(c2, r2, cm2, rm2)
    assert jnp.allclose(loss2, ref2, atol=1e-5, rtol=1e-4), (loss2, ref2)

    print("KERNEL_OK")
</pallas_src>

<mosaic_0001>
module attributes {stable_mosaic.version = 11 : i64} {
  func.func @kernel(%arg0: i32, %arg1: i32, %arg2: memref<2x8xf32, #tpu.memory_space<vmem>>, %arg3: memref<2x8xf32, #tpu.memory_space<vmem>>, %arg4: memref<2x8xf32, #tpu.memory_space<vmem>>, %arg5: memref<2x8xf32, #tpu.memory_space<vmem>>, %arg6: memref<2x1xf32, #tpu.memory_space<vmem>>, %arg7: memref<2x1xf32, #tpu.memory_space<vmem>>, %arg8: memref<2x1xf32, #tpu.memory_space<vmem>>, %arg9: memref<2x1xf32, #tpu.memory_space<vmem>>, %arg10: memref<2x1xf32, #tpu.memory_space<vmem>>) attributes {dimension_semantics = [#tpu.dimension_semantics<parallel>, #tpu.dimension_semantics<arbitrary>], iteration_bounds = array<i64: 1, 1>, scalar_prefetch = 0 : i64, scratch_operands = 4 : i64, tpu.core_type = #tpu.core_type<tc>, window_params = [{transform_indices = @transform_0, window_bounds = array<i64: 2, 8>}, {transform_indices = @transform_1, window_bounds = array<i64: 2, 8>}, {transform_indices = @transform_2, window_bounds = array<i64: 2, 8>}, {transform_indices = @transform_3, window_bounds = array<i64: 2, 8>}, {transform_indices = @transform_4, window_bounds = array<i64: 2, 1>}]} {
    %c0_i32 = arith.constant 0 : i32
    %0 = arith.cmpi eq, %arg1, %c0_i32 : i32
    %1 = arith.extui %0 : i1 to i32
    %c0_i32_0 = arith.constant 0 : i32
    %2 = arith.cmpi ne, %1, %c0_i32_0 : i32
    scf.if %2 {
      %cst_29 = arith.constant 0.000000e+00 : f32
      %32 = vector.broadcast %cst_29 : f32 to vector<2x1xf32>
      %c0_30 = arith.constant 0 : index
      %c0_31 = arith.constant 0 : index
      %33 = vector.load %arg7[%c0_30, %c0_31] : memref<2x1xf32, #tpu.memory_space<vmem>>, vector<2x1xf32>
      tpu.vector_store %arg7[%c0_30, %c0_31], %32 {strides = array<i32>} : memref<2x1xf32, #tpu.memory_space<vmem>>, vector<2x1xf32>,
      %cst_32 = arith.constant 0.000000e+00 : f32
      %34 = vector.broadcast %cst_32 : f32 to vector<2x1xf32>
      %c0_33 = arith.constant 0 : index
      %c0_34 = arith.constant 0 : index
      %35 = vector.load %arg8[%c0_33, %c0_34] : memref<2x1xf32, #tpu.memory_space<vmem>>, vector<2x1xf32>
      tpu.vector_store %arg8[%c0_33, %c0_34], %34 {strides = array<i32>} : memref<2x1xf32, #tpu.memory_space<vmem>>, vector<2x1xf32>,
      %cst_35 = arith.constant 0.000000e+00 : f32
      %36 = vector.broadcast %cst_35 : f32 to vector<2x1xf32>
      %c0_36 = arith.constant 0 : index
      %c0_37 = arith.constant 0 : index
      %37 = vector.load %arg9[%c0_36, %c0_37] : memref<2x1xf32, #tpu.memory_space<vmem>>, vector<2x1xf32>
      tpu.vector_store %arg9[%c0_36, %c0_37], %36 {strides = array<i32>} : memref<2x1xf32, #tpu.memory_space<vmem>>, vector<2x1xf32>,
      %cst_38 = arith.constant 0.000000e+00 : f32
      %38 = vector.broadcast %cst_38 : f32 to vector<2x1xf32>
      %c0_39 = arith.constant 0 : index
      %c0_40 = arith.constant 0 : index
      %39 = vector.load %arg10[%c0_39, %c0_40] : memref<2x1xf32, #tpu.memory_space<vmem>>, vector<2x1xf32>
      tpu.vector_store %arg10[%c0_39, %c0_40], %38 {strides = array<i32>} : memref<2x1xf32, #tpu.memory_space<vmem>>, vector<2x1xf32>,
    } else {
    }
    %c0 = arith.constant 0 : index
    %c0_1 = arith.constant 0 : index
    %3 = vector.load %arg2[%c0, %c0_1] : memref<2x8xf32, #tpu.memory_space<vmem>>, vector<2x8xf32>
    %c0_2 = arith.constant 0 : index
    %c0_3 = arith.constant 0 : index
    %4 = vector.load %arg3[%c0_2, %c0_3] : memref<2x8xf32, #tpu.memory_space<vmem>>, vector<2x8xf32>
    %c0_4 = arith.constant 0 : index
    %c0_5 = arith.constant 0 : index
    %5 = vector.load %arg4[%c0_4, %c0_5] : memref<2x8xf32, #tpu.memory_space<vmem>>, vector<2x8xf32>
    %c0_6 = arith.constant 0 : index
    %c0_7 = arith.constant 0 : index
    %6 = vector.load %arg7[%c0_6, %c0_7] : memref<2x1xf32, #tpu.memory_space<vmem>>, vector<2x1xf32>
    %7 = arith.mulf %3, %5 : vector<2x8xf32>
    %cst = arith.constant dense<0.000000e+00> : vector<2xf32>
    %8 = vector.multi_reduction <add>, %7, %cst [1] : vector<2x8xf32> to vector<2xf32>
    %9 = vector.shape_cast %8 : vector<2xf32> to vector<2x1xf32>
    %10 = arith.addf %6, %9 : vector<2x1xf32>
    %c0_8 = arith.constant 0 : index
    %c0_9 = arith.constant 0 : index
    %11 = vector.load %arg7[%c0_8, %c0_9] : memref<2x1xf32, #tpu.memory_space<vmem>>, vector<2x1xf32>
    tpu.vector_store %arg7[%c0_8, %c0_9], %10 {strides = array<i32>} : memref<2x1xf32, #tpu.memory_space<vmem>>, vector<2x1xf32>,
    %c0_10 = arith.constant 0 : index
    %c0_11 = arith.constant 0 : index
    %12 = vector.load %arg9[%c0_10, %c0_11] : memref<2x1xf32, #tpu.memory_space<vmem>>, vector<2x1xf32>
    %cst_12 = arith.constant dense<0.000000e+00> : vector<2xf32>
    %13 = vector.multi_reduction <add>, %5, %cst_12 [1] : vector<2x8xf32> to vector<2xf32>
    %14 = vector.shape_cast %13 : vector<2xf32> to vector<2x1xf32>
    %15 = arith.addf %12, %14 : vector<2x1xf32>
    %c0_13 = arith.constant 0 : index
    %c0_14 = arith.constant 0 : index
    %16 = vector.load %arg9[%c0_13, %c0_14] : memref<2x1xf32, #tpu.memory_space<vmem>>, vector<2x1xf32>
    tpu.vector_store %arg9[%c0_13, %c0_14], %15 {strides = array<i32>} : memref<2x1xf32, #tpu.memory_space<vmem>>, vector<2x1xf32>,
    %c0_15 = arith.constant 0 : index
    %c0_16 = arith.constant 0 : index
    %17 = vector.load %arg5[%c0_15, %c0_16] : memref<2x8xf32, #tpu.memory_space<vmem>>, vector<2x8xf32>
    %c0_17 = arith.constant 0 : index
    %c0_18 = arith.constant 0 : index
    %18 = vector.load %arg8[%c0_17, %c0_18] : memref<2x1xf32, #tpu.memory_space<vmem>>, vector<2x1xf32>
    %19 = arith.mulf %4, %17 : vector<2x8xf32>
    %cst_19 = arith.constant dense<0.000000e+00> : vector<2xf32>
    %20 = vector.multi_reduction <add>, %19, %cst_19 [1] : vector<2x8xf32> to vector<2xf32>
    %21 = vector.shape_cast %20 : vector<2xf32> to vector<2x1xf32>
    %22 = arith.addf %18, %21 : vector<2x1xf32>
    %c0_20 = arith.constant 0 : index
    %c0_21 = arith.constant 0 : index
    %23 = vector.load %arg8[%c0_20, %c0_21] : memref<2x1xf32, #tpu.memory_space<vmem>>, vector<2x1xf32>
    tpu.vector_store %arg8[%c0_20, %c0_21], %22 {strides = array<i32>} : memref<2x1xf32, #tpu.memory_space<vmem>>, vector<2x1xf32>,
    %c0_22 = arith.constant 0 : index
    %c0_23 = arith.constant 0 : index
    %24 = vector.load %arg10[%c0_22, %c0_23] : memref<2x1xf32, #tpu.memory_space<vmem>>, vector<2x1xf32>
    %cst_24 = arith.constant dense<0.000000e+00> : vector<2xf32>
    %25 = vector.multi_reduction <add>, %17, %cst_24 [1] : vector<2x8xf32> to vector<2xf32>
    %26 = vector.shape_cast %25 : vector<2xf32> to vector<2x1xf32>
    %27 = arith.addf %24, %26 : vector<2x1xf32>
    %c0_25 = arith.constant 0 : index
    %c0_26 = arith.constant 0 : index
    %28 = vector.load %arg10[%c0_25, %c0_26] : memref<2x1xf32, #tpu.memory_space<vmem>>, vector<2x1xf32>
    tpu.vector_store %arg10[%c0_25, %c0_26], %27 {strides = array<i32>} : memref<2x1xf32, #tpu.memory_space<vmem>>, vector<2x1xf32>,
    %c0_i32_27 = arith.constant 0 : i32
    %29 = arith.cmpi eq, %arg1, %c0_i32_27 : i32
    %30 = arith.extui %29 : i1 to i32
    %c0_i32_28 = arith.constant 0 : i32
    %31 = arith.cmpi ne, %30, %c0_i32_28 : i32
    scf.if %31 {
      %c0_29 = arith.constant 0 : index
      %c0_30 = arith.constant 0 : index
      %32 = vector.load %arg7[%c0_29, %c0_30] : memref<2x1xf32, #tpu.memory_space<vmem>>, vector<2x1xf32>
      %cst_31 = arith.constant dense<0.000000e+00> : vector<2xf32>
      %33 = vector.multi_reduction <add>, %32, %cst_31 [1] : vector<2x1xf32> to vector<2xf32>
      %34 = vector.shape_cast %33 : vector<2xf32> to vector<2x1xf32>
      %c0_32 = arith.constant 0 : index
      %c0_33 = arith.constant 0 : index
      %35 = vector.load %arg8[%c0_32, %c0_33] : memref<2x1xf32, #tpu.memory_space<vmem>>, vector<2x1xf32>
      %cst_34 = arith.constant dense<0.000000e+00> : vector<2xf32>
      %36 = vector.multi_reduction <add>, %35, %cst_34 [1] : vector<2x1xf32> to vector<2xf32>
      %37 = vector.shape_cast %36 : vector<2xf32> to vector<2x1xf32>
      %c0_35 = arith.constant 0 : index
      %c0_36 = arith.constant 0 : index
      %38 = vector.load %arg9[%c0_35, %c0_36] : memref<2x1xf32, #tpu.memory_space<vmem>>, vector<2x1xf32>
      %cst_37 = arith.constant dense<0.000000e+00> : vector<2xf32>
      %39 = vector.multi_reduction <add>, %38, %cst_37 [1] : vector<2x1xf32> to vector<2xf32>
      %40 = vector.shape_cast %39 : vector<2xf32> to vector<2x1xf32>
      %41 = arith.divf %34, %40 : vector<2x1xf32>
      %c0_38 = arith.constant 0 : index
      %c0_39 = arith.constant 0 : index
      %42 = vector.load %arg10[%c0_38, %c0_39] : memref<2x1xf32, #tpu.memory_space<vmem>>, vector<2x1xf32>
      %cst_40 = arith.constant dense<0.000000e+00> : vector<2xf32>
      %43 = vector.multi_reduction <add>, %42, %cst_40 [1] : vector<2x1xf32> to vector<2xf32>
      %44 = vector.shape_cast %43 : vector<2xf32> to vector<2x1xf32>
      %45 = arith.divf %37, %44 : vector<2x1xf32>
      %46 = arith.subf %41, %45 : vector<2x1xf32>
      %cst_41 = arith.constant 0.000000e+00 : f32
      %47 = vector.broadcast %cst_41 : f32 to vector<2x1xf32>
      %48 = arith.subf %47, %46 : vector<2x1xf32>
      %cst_42 = arith.constant 0.000000e+00 : f32
      %49 = vector.broadcast %cst_42 : f32 to vector<2x1xf32>
      %50 = arith.maximumf %48, %49 : vector<2x1xf32>
      %51 = math.absf %46 : vector<2x1xf32>
      %cst_43 = arith.constant 0.000000e+00 : f32
      %52 = vector.broadcast %cst_43 : f32 to vector<2x1xf32>
      %53 = arith.subf %52, %51 : vector<2x1xf32>
      %54 = math.exp %53 : vector<2x1xf32>
      %55 = math.log1p %54 : vector<2x1xf32>
      %56 = arith.addf %50, %55 : vector<2x1xf32>
      %c0_44 = arith.constant 0 : index
      %c0_45 = arith.constant 0 : index
      %57 = vector.load %arg6[%c0_44, %c0_45] : memref<2x1xf32, #tpu.memory_space<vmem>>, vector<2x1xf32>
      tpu.vector_store %arg6[%c0_44, %c0_45], %56 {strides = array<i32>} : memref<2x1xf32, #tpu.memory_space<vmem>>, vector<2x1xf32>,
    } else {
    }
    return
  }
  func.func @transform_0(%arg0: i32, %arg1: i32) -> (i32, i32) {
    %c0_i32 = arith.constant 0 : i32
    return %arg0, %arg1 : i32, i32
  }
  func.func @transform_1(%arg0: i32, %arg1: i32) -> (i32, i32) {
    %c0_i32 = arith.constant 0 : i32
    return %arg0, %arg1 : i32, i32
  }
  func.func @transform_2(%arg0: i32, %arg1: i32) -> (i32, i32) {
    %c0_i32 = arith.constant 0 : i32
    return %arg0, %arg1 : i32, i32
  }
  func.func @transform_3(%arg0: i32, %arg1: i32) -> (i32, i32) {
    %c0_i32 = arith.constant 0 : i32
    return %arg0, %arg1 : i32, i32
  }
  func.func @transform_4(%arg0: i32, %arg1: i32) -> (i32, i32) {
    %c0_i32 = arith.constant 0 : i32
    %c0_i32_0 = arith.constant 0 : i32
    return %arg0, %c0_i32 : i32, i32
  }
}

</mosaic_0001>

<llo_original>
// kernel: tpu_custom_call.1
$region0: #{tpu_custom_call.1}
  #allocation0 [shape = 'u32[]', space=smem, size = 0x4, offset = 0x4, fixed_abs, tag = 'smem constant byte address 0x4 - core index']
  #allocation1 [shape = 'u32[72,128]{1,0:T(1,128)}', space=vmem, size = 0x9000, scoped, tag = 'internal scratch']
  #allocation2 [shape = 'f32[2,1]{1,0:T(2,128)}', space=vmem, size = 0x400, scoped, tag = 'scratch operand']
  #allocation3 [shape = 'f32[2,1]{1,0:T(2,128)}', space=vmem, size = 0x400, scoped, tag = 'scratch operand']
  #allocation4 [shape = 'f32[2,1]{1,0:T(2,128)}', space=vmem, size = 0x400, scoped, tag = 'scratch operand']
  #allocation5 [shape = 'f32[2,1]{1,0:T(2,128)}', space=vmem, size = 0x400, scoped, tag = 'scratch operand']
  %s0 = inlined_call_operand.hbm [shape: f32[2,8], index: 0, kind: input, shape index: {}]
  %s1 = inlined_call_operand.hbm [shape: f32[2,8], index: 1, kind: input, shape index: {}]
  %s2 = inlined_call_operand.hbm [shape: f32[2,8], index: 2, kind: input, shape index: {}]
  %s3 = inlined_call_operand.vmem [shape: f32[2,8], index: 3, kind: input, shape index: {}]
  %s4 = inlined_call_operand.vmem [shape: f32[2,1], index: 4, kind: output, shape index: {}]
  %s5 = sld [smem:[#allocation0]]
  $region46: #{tpu_custom_call.1} parent=0
    _
  %s7 = ssub.s32 1, %s5
  %s8 = scalar_select 0, %s7, %s5
  $region1: #{tpu_custom_call.1} parent=0
    #allocation6 [shape = 'u8[1024]{0}', space=vmem, size = 0x400, scoped, tag = 'input window, operand 0, single buffered']
    #allocation7 [shape = 's32[1]{0}', space=sflag, size = 0x4, scoped, tag = 'scoped memory for tpu_custom_call.1']
    #allocation8 [shape = 'u8[1024]{0}', space=vmem, size = 0x400, scoped, tag = 'input window, operand 1, single buffered']
    #allocation9 [shape = 's32[1]{0}', space=sflag, size = 0x4, scoped, tag = 'scoped memory for tpu_custom_call.1']
    #allocation10 [shape = 'u8[1024]{0}', space=vmem, size = 0x400, scoped, tag = 'input window, operand 2, single buffered']
    %9 = vsyncpa [#allocation7], 0
    %10 = vsyncpa [#allocation9], 0
    // Predicated region
    $region2: #{tpu_custom_call.1} parent=1 // pred_check
      _
    $region3: #{tpu_custom_call.1} parent=1 // pred_check_branch
      %12 = sbr.rel (0) target = $region5
    $region4: #{tpu_custom_call.1} parent=1 // pred_region
      %14 = vsyncadd [#allocation7], 0
      %s16 = sshll.u32 %s0, 4
      %s17 = int_to_ptr.hbm [resolvable:$true] %s16
      %s18 = sshll.u32 [#allocation6], 4
      %s19 = int_to_ptr.vmem [resolvable:$true] %s18
      %21 = dma.hbm_to_vmem [thread:$0]  %s17, 32, %s19, [#allocation7]
    $region5: #{tpu_custom_call.1} parent=1 // pred_fallthru
      _
    // Predicated region
    $region6: #{tpu_custom_call.1} parent=1 // pred_check
      _
    $region7: #{tpu_custom_call.1} parent=1 // pred_check_branch
      %23 = sbr.rel (0) target = $region9
    $region8: #{tpu_custom_call.1} parent=1 // pred_region
      %25 = vsyncadd [#allocation9], 0
      %s27 = sshll.u32 %s1, 4
      %s28 = int_to_ptr.hbm [resolvable:$true] %s27
      %s29 = sshll.u32 [#allocation8], 4
      %s30 = int_to_ptr.vmem [resolvable:$true] %s29
      %32 = dma.hbm_to_vmem [thread:$0]  %s28, 32, %s30, [#allocation9]
    $region9: #{tpu_custom_call.1} parent=1 // pred_fallthru
      _
    // Predicated region
    $region10: #{tpu_custom_call.1} parent=1 // pred_check
      _
    $region11: #{tpu_custom_call.1} parent=1 // pred_check_branch
      %34 = sbr.rel (0) target = $region13
    $region12: #{tpu_custom_call.1} parent=1 // pred_region
      %36 = vsyncadd [#allocation9], 0
      %s38 = sshll.u32 %s2, 4
      %s39 = int_to_ptr.hbm [resolvable:$true] %s38
      %s40 = sshll.u32 [#allocation10], 4
      %s41 = int_to_ptr.vmem [resolvable:$true] %s40
      %43 = dma.hbm_to_vmem [thread:$0]  %s39, 32, %s41, [#allocation9]
    $region13: #{tpu_custom_call.1} parent=1 // pred_fallthru
      _
    // Predicated region
    $region14: #{tpu_custom_call.1} parent=1 // pred_check
      _
    $region15: #{tpu_custom_call.1} parent=1 // pred_check_branch
      %45 = sbr.rel (0) target = $region17
    $region16: #{tpu_custom_call.1} parent=1 // pred_region
      _
    $region17: #{tpu_custom_call.1} parent=1 // pred_fallthru
      _
    // Predicated region
    $region18: #{tpu_custom_call.1} parent=1 // pred_check
      _
    $region19: #{tpu_custom_call.1} parent=1 // pred_check_branch
      %47 = sbr.rel (0) target = $region21
    $region20: #{tpu_custom_call.1} parent=1 // pred_region
      %49 = dma.done [#allocation7], 32
    $region21: #{tpu_custom_call.1} parent=1 // pred_fallthru
      _
    // Predicated region
    $region22: #{tpu_custom_call.1} parent=1 // pred_check
      _
    $region23: #{tpu_custom_call.1} parent=1 // pred_check_branch
      %51 = sbr.rel (0) target = $region25
    $region24: #{tpu_custom_call.1} parent=1 // pred_region
      %53 = dma.done [#allocation9], 32
    $region25: #{tpu_custom_call.1} parent=1 // pred_fallthru
      _
    // Predicated region
    $region26: #{tpu_custom_call.1} parent=1 // pred_check
      _
    $region27: #{tpu_custom_call.1} parent=1 // pred_check_branch
      %55 = sbr.rel (0) target = $region29
    $region28: #{tpu_custom_call.1} parent=1 // pred_region
      %57 = dma.done [#allocation9], 32
    $region29: #{tpu_custom_call.1} parent=1 // pred_fallthru
      _
    %p58 = scmp.eq.s32.totalorder 0, 0
    // Predicated region
    $region30: #{tpu_custom_call.1} parent=1 // pred_check
      %p59 = pneg %p58
    $region31: #{tpu_custom_call.1} parent=1 // pred_check_branch
      %61 = sbr.rel (%p59) target = $region33
    $region32: #{tpu_custom_call.1} parent=1 // pred_region
      %vm62 = vcmask 1024
      %63 = vst.msk [vmem:[#allocation2] sm:$0x3] %vm62, 0.0
      %64 = vst.msk [vmem:[#allocation3] sm:$0x3] %vm62, 0.0
      %65 = vst.msk [vmem:[#allocation4] sm:$0x3] %vm62, 0.0
      %66 = vst.msk [vmem:[#allocation5] sm:$0x3] %vm62, 0.0
    $region33: #{tpu_custom_call.1} parent=1 // pred_fallthru
      _
    %v67 = vld [vmem:[#allocation6] sm:$0x3]
    %v68 = vld [vmem:[#allocation8] sm:$0x3]
    %v69 = vld [vmem:[#allocation10] sm:$0x3]
    %v70 = vld [vmem:[#allocation2] sm:$0x3]
    %v71 = vmul.f32 %v67, %v69
    %vm72 = vcmask 58368
    %v73 = vsel %vm72, %v71, 0.0
    %74 = vadd.xlane.f32.xlu0 %v73
    %v75 = vpop.xlane.xlu0 %74
    %v76 = vadd.f32 %v70, %v75
    %vm77 = vcmask 1024
    %78 = vst.msk [vmem:[#allocation2] sm:$0x3] %vm77, %v76
    %v79 = vld [vmem:[#allocation4] sm:$0x3]
    %v80 = vsel %vm72, %v69, 0.0
    %81 = vadd.xlane.f32.xlu0 %v80
    %v82 = vpop.xlane.xlu0 %81
    %v83 = vadd.f32 %v79, %v82
    %84 = vst.msk [vmem:[#allocation4] sm:$0x3] %vm77, %v83
    %v85 = vld [vmem:[%s3] sm:$0x3]
    %v86 = vld [vmem:[#allocation3] sm:$0x3]
    %v87 = vmul.f32 %v68, %v85
    %v88 = vsel %vm72, %v87, 0.0
    %89 = vadd.xlane.f32.xlu0 %v88
    %v90 = vpop.xlane.xlu0 %89
    %v91 = vadd.f32 %v86, %v90
    %92 = vst.msk [vmem:[#allocation3] sm:$0x3] %vm77, %v91
    %v93 = vld [vmem:[#allocation5] sm:$0x3]
    %v94 = vsel %vm72, %v85, 0.0
    %95 = vadd.xlane.f32.xlu0 %v94
    %v96 = vpop.xlane.xlu0 %95
    %v97 = vadd.f32 %v93, %v96
    %98 = vst.msk [vmem:[#allocation5] sm:$0x3] %vm77, %v97
    // Predicated region
    $region34: #{tpu_custom_call.1} parent=1 // pred_check
      %p99 = pneg %p58
    $region35: #{tpu_custom_call.1} parent=1 // pred_check_branch
      %101 = sbr.rel (%p99) target = $region37
    $region36: #{tpu_custom_call.1} parent=1 // pred_region
      %v102 = vld [vmem:[#allocation2] sm:$0x3]
      %v103 = vadd.f32 %v102, 0.0
      %v104 = vld [vmem:[#allocation3] sm:$0x3]
      %v105 = vadd.f32 %v104, 0.0
      %v106 = vld [vmem:[#allocation4] sm:$0x3]
      %v107 = vadd.f32 %v106, 0.0
      %v108 = vrcp.pop %v107
      %v109 = vmul.f32 %v107, %v108
      %v110 = vsub.f32 1.0, %v109
      %v111 = vmul.f32 %v108, %v110
      %v112 = vadd.f32 %v108, %v111
      %vm113 = vweird.f32 %v107
      %vm114 = vweird.f32 %v108
      %vm115 = vmor %vm113, %vm114
      %v116 = vsel %vm115, %v108, %v112
      %v117 = vand.u32 2147483647, %v107
      %vm118 = vcmp.eq.f32.partialorder %v117, 8.507059e+37
      %v119 = vand.u32 %v107, 2147483648
      %v120 = vor.u32 1.1754944e-38, %v119
      %v121 = vsel %vm118, %v120, %v116
      %v122 = vmul.f32 %v103, %v121
      %v123 = vld [vmem:[#allocation5] sm:$0x3]
      %v124 = vadd.f32 %v123, 0.0
      %v125 = vrcp.pop %v124
      %v126 = vmul.f32 %v124, %v125
      %v127 = vsub.f32 1.0, %v126
      %v128 = vmul.f32 %v125, %v127
      %v129 = vadd.f32 %v125, %v128
      %vm130 = vweird.f32 %v124
      %vm131 = vweird.f32 %v125
      %vm132 = vmor %vm130, %vm131
      %v133 = vsel %vm132, %v125, %v129
      %v134 = vand.u32 2147483647, %v124
      %vm135 = vcmp.eq.f32.partialorder %v134, 8.507059e+37
      %v136 = vand.u32 %v124, 2147483648
      %v137 = vor.u32 1.1754944e-38, %v136
      %v138 = vsel %vm135, %v137, %v133
      %v139 = vmul.f32 %v105, %v138
      %v140 = vsub.f32 %v122, %v139
      %v141 = vsub.f32 0.0, %v140
      %v142 = vmax.f32 %v141, 0.0
      %v143 = vand.u32 2147483647, %v140
      %v144 = vsub.f32 0.0, %v143
      %v145 = vmul.f32 %v144, 1.442695
      %v146 = vpow.pop %v145
      %v147 = vadd.f32 %v146, 1.0
      %v148 = vlog2.pop %v147
      %v149 = vmul.f32 %v148, 0.6931472
      %v150 = vmul.f32 -0.5, %v146
      %v151 = vadd.f32 %v150, 1.0
      %v152 = vmul.f32 %v151, %v146
      %v153 = vand.u32 2147483647, %v146
      %vm154 = vcmp.lt.f32.partialorder %v153, 0.0004427343
      %v155 = vsel %vm154, %v152, %v149
      %v156 = vadd.f32 %v142, %v155
      %157 = vst.msk [vmem:[%s4] sm:$0x3] %vm77, %v156
    $region37: #{tpu_custom_call.1} parent=1 // pred_fallthru
      _
    // Predicated region
    $region38: #{tpu_custom_call.1} parent=1 // pred_check
      _
    $region39: #{tpu_custom_call.1} parent=1 // pred_check_branch
      %159 = sbr.rel (0) target = $region41
    $region40: #{tpu_custom_call.1} parent=1 // pred_region
      _
    $region41: #{tpu_custom_call.1} parent=1 // pred_fallthru
      _
    // Predicated region
    $region42: #{tpu_custom_call.1} parent=1 // pred_check
      _
    $region43: #{tpu_custom_call.1} parent=1 // pred_check_branch
      %161 = sbr.rel (0) target = $region45
    $region44: #{tpu_custom_call.1} parent=1 // pred_region
      _
    $region45: #{tpu_custom_call.1} parent=1 // pred_fallthru
      _
    %162 = vsyncpa [#allocation7], 1
    %163 = vsyncpa [#allocation9], 1

</llo_original>
